<compile_context>
chip_gen: v7x
topology: tpu7x:2x2x1
jax: 0.10.0
libtpu: 0.0.40
codegen_flags: <defaults>
</compile_context>

<pallas_src>
import functools
from functools import partial

import jax
import jax.numpy as jnp
from jax.experimental import pallas as pl
from jax.experimental.pallas import tpu as pltpu


def _round_up(n, m):
    return ((n + m - 1) // m) * m


@functools.lru_cache(maxsize=None)
def _tpu_vmem_and_cores():
    """(VMEM bytes per TensorCore, TensorCores per chip) — defensively queried."""
    vmem_cap = 64 * 1024 * 1024            # conservative default (v7x per-TC VMEM)
    n_cores = 1
    try:
        info = pltpu.get_tpu_info()
        cap = getattr(info, "vmem_capacity_bytes", None)
        if cap:
            vmem_cap = int(cap)
        n_cores = 0
        for attr in ("num_cores", "core_count", "num_tensorcores",
                     "tensorcore_count", "cores_per_chip"):
            v = getattr(info, attr, None)
            try:
                v = int(v)
            except (TypeError, ValueError):
                continue
            if 0 < v <= 8:
                n_cores = v
                break
        if not n_cores:
            # Heuristic: the 64 MiB-per-TC generation (v7x) has 2 TCs per chip.
            n_cores = 2 if vmem_cap <= 64 * 1024 * 1024 else 1
    except Exception:                      # non-TPU backends / older runtimes
        vmem_cap, n_cores = 64 * 1024 * 1024, 1
    return vmem_cap, n_cores


def _shift_zero(x, d, axis):
    """y[..., i, ...] = x[..., i + d, ...] along `axis`; zero-filled outside.

    `d` is a static Python int, so this lowers to a static slice plus a
    concat with a thin zero strip — no padded scratch, no circular-wrap mask.
    """
    n = x.shape[axis]
    if d == 0:
        return x
    if abs(d) >= n:
        return jnp.zeros_like(x)
    zshape = list(x.shape)
    zshape[axis] = abs(d)
    zeros = jnp.zeros(zshape, x.dtype)
    keep = [slice(None)] * x.ndim
    if d > 0:
        keep[axis] = slice(d, n)
        return jnp.concatenate([x[tuple(keep)], zeros], axis=axis)
    keep[axis] = slice(0, n + d)
    return jnp.concatenate([zeros, x[tuple(keep)]], axis=axis)


def _wiener_kernel(x_ref, out_ref, *, w):
    # x_ref  : (nb, 3, H, W) original pixels (input dtype)
    # out_ref: (nb, 3, H, W) float32 result
    H, W = x_ref.shape[2], x_ref.shape[3]
    lo, hi = w // 2, (w - 1) // 2          # scipy 'same' window: offsets in [-lo, hi]
    inv_win2 = 1.0 / float(w * w)
    inv_hw = 1.0 / float(H * W)

    x = x_ref[...].astype(jnp.float32)     # cast after load (no wrapper-side cast)

    # Separable w x w zero-filled box sums of x and x^2 — lane (W) axis first.
    rsum = x
    rsq = x * x
    for d in range(-lo, hi + 1):
        if d == 0:
            continue
        s = _shift_zero(x, d, axis=3)
        rsum = rsum + s
        rsq = rsq + s * s

    # Sublane (H) axis pass.
    lsum = rsum
    lsq = rsq
    for d in range(-lo, hi + 1):
        if d == 0:
            continue
        lsum = lsum + _shift_zero(rsum, d, axis=2)
        lsq = lsq + _shift_zero(rsq, d, axis=2)

    lmean = lsum * inv_win2
    lvar = lsq * inv_win2 - lmean * lmean

    # Per-(image, channel) noise power = mean of the local variance.
    noise = jnp.sum(jnp.sum(lvar, axis=3, keepdims=True),
                    axis=2, keepdims=True) * inv_hw

    # Wiener update.  Exact divide (not approx reciprocal) so nearly-constant
    # regions (lvar ~= noise ~= 0) behave like the scipy reference; the only
    # NaNs are scipy's own 0/0 case (a perfectly constant channel).
    im = x_ref[...].astype(jnp.float32)    # re-read: keeps peak live temps low
    res = lmean + (im - lmean) * (1.0 - noise / lvar)
    out_ref[...] = jnp.where(lvar < noise, lmean, res)


@partial(jax.jit, static_argnums=(1,))
def wiener_filter_batch(x, w):
    """x: (B, C, H, W), C >= 3.  scipy-style Wiener filter on channels 0..2.

    Returns (B, 3, H, W) float32 (reference is float64; see TODO above)."""
    B, C, H, W = x.shape
    assert C >= 3, "Winner reads exactly the first 3 channels"
    w = int(w)

    vmem_cap, n_cores = _tpu_vmem_and_cores()
    vmem_limit = int(vmem_cap * 0.9)

    # --- images per grid step ------------------------------------------------
    # Per-image working set with (8, 128) layout rounding: ~6 concurrently-live
    # full f32 (3, H, W) tensors plus double-buffered input and output blocks;
    # 12 planes is a conservative upper bound.
    hr, wr = _round_up(H, 8), _round_up(W, 128)
    plane_bytes = 3 * hr * wr * 4
    bytes_per_img = 12 * plane_bytes
    budget = int(vmem_cap * 0.72)
    nb_cap = max(1, min(B, budget // max(bytes_per_img, 1)))
    if n_cores > 1 and B >= n_cores:
        # keep >= n_cores grid steps so the 'parallel' axis shards across cores
        nb_cap = min(nb_cap, max(1, B // n_cores))
    nb = next(d for d in range(nb_cap, 0, -1) if B % d == 0)
    grid = (B // nb,)

    n_pix = B * 3 * H * W
    cost = pl.CostEstimate(
        flops=int(n_pix * (5 * w + 14)),          # separable box sums + tail
        transcendentals=int(n_pix),               # per-pixel divide
        bytes_accessed=int(n_pix * (x.dtype.itemsize + 4)),
    )

    return pl.pallas_call(
        partial(_wiener_kernel, w=w),
        out_shape=jax.ShapeDtypeStruct((B, 3, H, W), jnp.float32),
        grid=grid,
        # Read channels 0..2 of `nb` images directly from the (B, C, H, W)
        # input: no wrapper-side slice / cast / pad, no extra HBM round trip.
        in_specs=[pl.BlockSpec((nb, 3, H, W), lambda i: (i, 0, 0, 0))],
        out_specs=pl.BlockSpec((nb, 3, H, W), lambda i: (i, 0, 0, 0)),
        compiler_params=pltpu.CompilerParams(
            dimension_semantics=("parallel",),
            vmem_limit_bytes=vmem_limit),
        cost_estimate=cost,
    )(x)


class Winner:
    """JAX/Pallas port of the PyTorch `Winner` noise layer."""

    def __init__(self, w_r):
        self.w = int(w_r)

    def __call__(self, noise_and_cover):
        encode_image = noise_and_cover[0]          # (B, C, H, W)
        noise_and_cover[0] = wiener_filter_batch(encode_image, self.w)
        return noise_and_cover


def _wiener_reference(x, w):
    """Pure-JAX float32 reference (mirrors scipy.signal.wiener per channel)."""
    x = x[:, :3].astype(jnp.float32)
    _, _, H, W = x.shape
    lo, hi = w // 2, (w - 1) // 2
    xp = jnp.pad(x, ((0, 0), (0, 0), (lo, hi), (lo, hi)))
    lsum = jnp.zeros_like(x)
    lsq = jnp.zeros_like(x)
    for di in range(w):
        for dj in range(w):
            s = xp[:, :, di:di + H, dj:dj + W]
            lsum = lsum + s
            lsq = lsq + s * s
    lmean = lsum / (w * w)
    lvar = lsq / (w * w) - lmean * lmean
    noise = jnp.mean(lvar, axis=(2, 3), keepdims=True)
    res = lmean + (x - lmean) * (1.0 - noise / lvar)
    return jnp.where(lvar < noise, lmean, res)


if __name__ == "__main__":
    key = jax.random.PRNGKey(0)
    B, C, H, W = 2, 4, 16, 16
    x = jax.random.uniform(key, (B, C, H, W), dtype=jnp.float32)

    winner = Winner(w_r=3)
    result = winner([x, x])                 # [encoded_image, cover_image]
    out = jax.block_until_ready(result[0])

    assert out.shape == (B, 3, H, W)
    assert out.dtype == jnp.float32
    assert bool(jnp.isfinite(out).all())

    ref = _wiener_reference(x, 3)
    assert bool(jnp.allclose(out, ref, rtol=1e-4, atol=1e-4)), (
        "max abs diff vs reference: %g" % float(jnp.max(jnp.abs(out - ref))))

    print("KERNEL_OK")
</pallas_src>

<mosaic_0001>
module attributes {stable_mosaic.version = 11 : i64} {
  func.func @_wiener_kernel(%arg0: i32, %arg1: memref<2x3x16x16xf32, #tpu.memory_space<vmem>>, %arg2: memref<2x3x16x16xf32, #tpu.memory_space<vmem>>) attributes {dimension_semantics = [#tpu.dimension_semantics<parallel>], iteration_bounds = array<i64: 1>, scalar_prefetch = 0 : i64, scratch_operands = 0 : i64, tpu.core_type = #tpu.core_type<tc>, window_params = [{transform_indices = @transform_0, window_bounds = array<i64: 2, 3, 16, 16>}, {transform_indices = @transform_1, window_bounds = array<i64: 2, 3, 16, 16>}]} {
    %c0 = arith.constant 0 : index
    %c0_0 = arith.constant 0 : index
    %c0_1 = arith.constant 0 : index
    %c0_2 = arith.constant 0 : index
    %0 = vector.load %arg1[%c0, %c0_0, %c0_1, %c0_2] : memref<2x3x16x16xf32, #tpu.memory_space<vmem>>, vector<2x3x16x16xf32>
    %1 = arith.mulf %0, %0 : vector<2x3x16x16xf32>
    %cst = arith.constant 0.000000e+00 : f32
    %2 = vector.broadcast %cst : f32 to vector<2x3x16x1xf32>
    %3 = vector.extract_strided_slice %0 {offsets = [0, 0, 0, 0], sizes = [2, 3, 16, 15], strides = [1, 1, 1, 1]} : vector<2x3x16x16xf32> to vector<2x3x16x15xf32>
    %4 = tpu.concatenate %2, %3 in 3 : vector<2x3x16x1xf32>, vector<2x3x16x15xf32> -> vector<2x3x16x16xf32>
    %5 = arith.addf %0, %4 : vector<2x3x16x16xf32>
    %6 = arith.mulf %4, %4 : vector<2x3x16x16xf32>
    %7 = arith.addf %1, %6 : vector<2x3x16x16xf32>
    %cst_3 = arith.constant 0.000000e+00 : f32
    %8 = vector.broadcast %cst_3 : f32 to vector<2x3x16x1xf32>
    %9 = vector.extract_strided_slice %0 {offsets = [0, 0, 0, 1], sizes = [2, 3, 16, 15], strides = [1, 1, 1, 1]} : vector<2x3x16x16xf32> to vector<2x3x16x15xf32>
    %10 = tpu.concatenate %9, %8 in 3 : vector<2x3x16x15xf32>, vector<2x3x16x1xf32> -> vector<2x3x16x16xf32>
    %11 = arith.addf %5, %10 : vector<2x3x16x16xf32>
    %12 = arith.mulf %10, %10 : vector<2x3x16x16xf32>
    %13 = arith.addf %7, %12 : vector<2x3x16x16xf32>
    %cst_4 = arith.constant 0.000000e+00 : f32
    %14 = vector.broadcast %cst_4 : f32 to vector<2x3x1x16xf32>
    %15 = vector.extract_strided_slice %11 {offsets = [0, 0, 0, 0], sizes = [2, 3, 15, 16], strides = [1, 1, 1, 1]} : vector<2x3x16x16xf32> to vector<2x3x15x16xf32>
    %16 = tpu.concatenate %14, %15 in 2 : vector<2x3x1x16xf32>, vector<2x3x15x16xf32> -> vector<2x3x16x16xf32>
    %17 = arith.addf %11, %16 : vector<2x3x16x16xf32>
    %cst_5 = arith.constant 0.000000e+00 : f32
    %18 = vector.broadcast %cst_5 : f32 to vector<2x3x1x16xf32>
    %19 = vector.extract_strided_slice %13 {offsets = [0, 0, 0, 0], sizes = [2, 3, 15, 16], strides = [1, 1, 1, 1]} : vector<2x3x16x16xf32> to vector<2x3x15x16xf32>
    %20 = tpu.concatenate %18, %19 in 2 : vector<2x3x1x16xf32>, vector<2x3x15x16xf32> -> vector<2x3x16x16xf32>
    %21 = arith.addf %13, %20 : vector<2x3x16x16xf32>
    %cst_6 = arith.constant 0.000000e+00 : f32
    %22 = vector.broadcast %cst_6 : f32 to vector<2x3x1x16xf32>
    %23 = vector.extract_strided_slice %11 {offsets = [0, 0, 1, 0], sizes = [2, 3, 15, 16], strides = [1, 1, 1, 1]} : vector<2x3x16x16xf32> to vector<2x3x15x16xf32>
    %24 = tpu.concatenate %23, %22 in 2 : vector<2x3x15x16xf32>, vector<2x3x1x16xf32> -> vector<2x3x16x16xf32>
    %25 = arith.addf %17, %24 : vector<2x3x16x16xf32>
    %cst_7 = arith.constant 0.000000e+00 : f32
    %26 = vector.broadcast %cst_7 : f32 to vector<2x3x1x16xf32>
    %27 = vector.extract_strided_slice %13 {offsets = [0, 0, 1, 0], sizes = [2, 3, 15, 16], strides = [1, 1, 1, 1]} : vector<2x3x16x16xf32> to vector<2x3x15x16xf32>
    %28 = tpu.concatenate %27, %26 in 2 : vector<2x3x15x16xf32>, vector<2x3x1x16xf32> -> vector<2x3x16x16xf32>
    %29 = arith.addf %21, %28 : vector<2x3x16x16xf32>
    %cst_8 = arith.constant 0.111111112 : f32
    %30 = vector.broadcast %cst_8 : f32 to vector<2x3x16x16xf32>
    %31 = arith.mulf %25, %30 : vector<2x3x16x16xf32>
    %cst_9 = arith.constant 0.111111112 : f32
    %32 = vector.broadcast %cst_9 : f32 to vector<2x3x16x16xf32>
    %33 = arith.mulf %29, %32 : vector<2x3x16x16xf32>
    %34 = arith.mulf %31, %31 : vector<2x3x16x16xf32>
    %35 = arith.subf %33, %34 : vector<2x3x16x16xf32>
    %cst_10 = arith.constant dense<0.000000e+00> : vector<2x3x16xf32>
    %36 = vector.multi_reduction <add>, %35, %cst_10 [3] : vector<2x3x16x16xf32> to vector<2x3x16xf32>
    %37 = vector.shape_cast %36 : vector<2x3x16xf32> to vector<2x3x16x1xf32>
    %cst_11 = arith.constant dense<0.000000e+00> : vector<2x3x1xf32>
    %38 = vector.multi_reduction <add>, %37, %cst_11 [2] : vector<2x3x16x1xf32> to vector<2x3x1xf32>
    %39 = vector.shape_cast %38 : vector<2x3x1xf32> to vector<2x3x1x1xf32>
    %cst_12 = arith.constant 3.906250e-03 : f32
    %40 = vector.broadcast %cst_12 : f32 to vector<2x3x1x1xf32>
    %41 = arith.mulf %39, %40 : vector<2x3x1x1xf32>
    %c0_13 = arith.constant 0 : index
    %c0_14 = arith.constant 0 : index
    %c0_15 = arith.constant 0 : index
    %c0_16 = arith.constant 0 : index
    %42 = vector.load %arg1[%c0_13, %c0_14, %c0_15, %c0_16] : memref<2x3x16x16xf32, #tpu.memory_space<vmem>>, vector<2x3x16x16xf32>
    %43 = arith.subf %42, %31 : vector<2x3x16x16xf32>
    %44 = vector.broadcast %41 : vector<2x3x1x1xf32> to vector<2x3x16x16xf32>
    %45 = arith.divf %44, %35 : vector<2x3x16x16xf32>
    %cst_17 = arith.constant 1.000000e+00 : f32
    %46 = vector.broadcast %cst_17 : f32 to vector<2x3x16x16xf32>
    %47 = arith.subf %46, %45 : vector<2x3x16x16xf32>
    %48 = arith.mulf %43, %47 : vector<2x3x16x16xf32>
    %49 = arith.addf %31, %48 : vector<2x3x16x16xf32>
    %50 = vector.broadcast %41 : vector<2x3x1x1xf32> to vector<2x3x16x16xf32>
    %51 = arith.cmpf olt, %35, %50 : vector<2x3x16x16xf32>
    %52 = arith.select %51, %31, %49 : vector<2x3x16x16xi1>, vector<2x3x16x16xf32>
    %c0_18 = arith.constant 0 : index
    %c0_19 = arith.constant 0 : index
    %c0_20 = arith.constant 0 : index
    %c0_21 = arith.constant 0 : index
    %53 = vector.load %arg2[%c0_18, %c0_19, %c0_20, %c0_21] : memref<2x3x16x16xf32, #tpu.memory_space<vmem>>, vector<2x3x16x16xf32>
    tpu.vector_store %arg2[%c0_18, %c0_19, %c0_20, %c0_21], %52 {strides = array<i32>} : memref<2x3x16x16xf32, #tpu.memory_space<vmem>>, vector<2x3x16x16xf32>,
    return
  }
  func.func @transform_0(%arg0: i32) -> (i32, i32, i32, i32) {
    %c0_i32 = arith.constant 0 : i32
    %c0_i32_0 = arith.constant 0 : i32
    %c0_i32_1 = arith.constant 0 : i32
    %c0_i32_2 = arith.constant 0 : i32
    return %arg0, %c0_i32, %c0_i32_0, %c0_i32_1 : i32, i32, i32, i32
  }
  func.func @transform_1(%arg0: i32) -> (i32, i32, i32, i32) {
    %c0_i32 = arith.constant 0 : i32
    %c0_i32_0 = arith.constant 0 : i32
    %c0_i32_1 = arith.constant 0 : i32
    %c0_i32_2 = arith.constant 0 : i32
    return %arg0, %c0_i32, %c0_i32_0, %c0_i32_1 : i32, i32, i32, i32
  }
}

</mosaic_0001>

<llo_original>
// kernel: wiener_filter_batch.1
$region0: #{wiener_filter_batch.1}
  #allocation0 [shape = 'u32[]', space=smem, size = 0x4, offset = 0x4, fixed_abs, tag = 'smem constant byte address 0x4 - core index']
  #allocation1 [shape = 'u32[144,128]{1,0:T(1,128)}', space=vmem, size = 0x12000, scoped, tag = 'internal scratch']
  #allocation6 [shape = 's32[]', space=sflag, size = 0x4, offset = 0, fixed_abs, tag = 'sflag constant byte address 0x0 - dummy sync flag']
  %s0 = inlined_call_operand.hbm [shape: f32[2,4,16,16], index: 0, kind: input, shape index: {}]
  %s1 = inlined_call_operand.hbm [shape: f32[2,3,16,16], index: 1, kind: output, shape index: {}]
  %s2 = sld [smem:[#allocation0]]
  $region18: #{wiener_filter_batch.1} parent=0
    _
  %s4 = ssub.s32 1, %s2
  %s5 = scalar_select 0, %s4, %s2
  $region1: #{wiener_filter_batch.1} parent=0
    #allocation2 [shape = 'u8[49152]{0}', space=vmem, size = 0xc000, scoped, tag = 'input window, operand 0, single buffered']
    #allocation3 [shape = 's32[1]{0}', space=sflag, size = 0x4, scoped, tag = 'scoped memory for wiener_filter_batch.1']
    #allocation4 [shape = 's32[1]{0}', space=sflag, size = 0x4, scoped, tag = 'scoped memory for wiener_filter_batch.1']
    #allocation5 [shape = 'u8[49152]{0}', space=vmem, size = 0xc000, scoped, tag = 'output window, operand 0, single buffered']
    %6 = vsyncpa [#allocation3], 0
    %7 = vsyncpa [#allocation4], 0
    // Predicated region
    $region2: #{wiener_filter_batch.1} parent=1 // pred_check
      _
    $region3: #{wiener_filter_batch.1} parent=1 // pred_check_branch
      %9 = sbr.rel (0) target = $region5
    $region4: #{wiener_filter_batch.1} parent=1 // pred_region
      #allocation7 [shape = 'u32[6]{0}', space=smem, size = 0x18, scoped, tag = 'DMA stride descriptor']
      %s11 = ssub.s32 1536, 1536
      %12 = vsyncadd [#allocation3], %s11
      %s14 = sshll.u32 1, 14
      %s15 = sxor.u32 4294967295, %s14
      %s17 = sld [smem:[#allocation0]]
      %s18 = sadd.s32 2, %s17
      %s20 = sshll.u32 7, 26
      %s21 = sxor.u32 4294967295, %s20
      %s22 = sand.u32 0, %s21
      %s23 = sshll.u32 %s18, 26
      %s24 = sor.u32 %s22, %s23
      %s25 = sshll.u32 [#allocation2], 4
      %s26 = int_to_ptr.vmem [resolvable:$true] %s25
      %32 = sst [smem:[#allocation7]] 1024
      %s33 = scalar_lea.smem [#allocation7], 1
      %34 = sst [smem:[%s33]] 768
      %s35 = scalar_lea.smem [#allocation7], 2
      %36 = sst [smem:[%s35]] 6
      %s37 = scalar_lea.smem [#allocation7], 3
      %38 = sst [smem:[%s37]] 128
      %s39 = scalar_lea.smem [#allocation7], 4
      %40 = sst [smem:[%s39]] 128
      %s41 = scalar_lea.smem [#allocation7], 5
      %42 = sst [smem:[%s41]] 8
      %44 = dma.general %s0, 1536, %s26, [#allocation3], [#allocation6], [#allocation7], %s24, 0
    $region5: #{wiener_filter_batch.1} parent=1 // pred_fallthru
      _
    // Predicated region
    $region6: #{wiener_filter_batch.1} parent=1 // pred_check
      _
    $region7: #{wiener_filter_batch.1} parent=1 // pred_check_branch
      %46 = sbr.rel (0) target = $region9
    $region8: #{wiener_filter_batch.1} parent=1 // pred_region
      %47 = dma.done [#allocation3], 1536
    $region9: #{wiener_filter_batch.1} parent=1 // pred_fallthru
      _
    %v48 = vld [vmem:[#allocation2] sm:$0xff]
    %v49 = vld [vmem:[#allocation2 + $0x8] sm:$0xff]
    %v50 = vld [vmem:[#allocation2 + $0x10] sm:$0xff]
    %v51 = vld [vmem:[#allocation2 + $0x18] sm:$0xff]
    %v52 = vld [vmem:[#allocation2 + $0x20] sm:$0xff]
    %v53 = vld [vmem:[#allocation2 + $0x28] sm:$0xff]
    %v54 = vld [vmem:[#allocation2 + $0x30] sm:$0xff]
    %v55 = vld [vmem:[#allocation2 + $0x38] sm:$0xff]
    %v56 = vld [vmem:[#allocation2 + $0x40] sm:$0xff]
    %v57 = vld [vmem:[#allocation2 + $0x48] sm:$0xff]
    %v58 = vld [vmem:[#allocation2 + $0x50] sm:$0xff]
    %v59 = vld [vmem:[#allocation2 + $0x58] sm:$0xff]
    %v60 = vmul.f32 %v48, %v48
    %v61 = vmul.f32 %v49, %v49
    %v62 = vmul.f32 %v50, %v50
    %v63 = vmul.f32 %v51, %v51
    %v64 = vmul.f32 %v52, %v52
    %v65 = vmul.f32 %v53, %v53
    %v66 = vmul.f32 %v54, %v54
    %v67 = vmul.f32 %v55, %v55
    %v68 = vmul.f32 %v56, %v56
    %v69 = vmul.f32 %v57, %v57
    %v70 = vmul.f32 %v58, %v58
    %v71 = vmul.f32 %v59, %v59
    %84 = vrot.lane.b32.xlu0 %v48, 1
    %v85 = vpop.permute.xlu0 %84
    %86 = vrot.lane.b32.xlu0 %v49, 1
    %v87 = vpop.permute.xlu0 %86
    %88 = vrot.lane.b32.xlu0 %v50, 1
    %v89 = vpop.permute.xlu0 %88
    %90 = vrot.lane.b32.xlu0 %v51, 1
    %v91 = vpop.permute.xlu0 %90
    %92 = vrot.lane.b32.xlu0 %v52, 1
    %v93 = vpop.permute.xlu0 %92
    %94 = vrot.lane.b32.xlu0 %v53, 1
    %v95 = vpop.permute.xlu0 %94
    %96 = vrot.lane.b32.xlu0 %v54, 1
    %v97 = vpop.permute.xlu0 %96
    %98 = vrot.lane.b32.xlu0 %v55, 1
    %v99 = vpop.permute.xlu0 %98
    %100 = vrot.lane.b32.xlu0 %v56, 1
    %v101 = vpop.permute.xlu0 %100
    %102 = vrot.lane.b32.xlu0 %v57, 1
    %v103 = vpop.permute.xlu0 %102
    %104 = vrot.lane.b32.xlu0 %v58, 1
    %v105 = vpop.permute.xlu0 %104
    %106 = vrot.lane.b32.xlu0 %v59, 1
    %v107 = vpop.permute.xlu0 %106
    %vm120 = vcmask 7168
    %v121 = vsel %vm120, 0.0, %v85
    %v122 = vsel %vm120, 0.0, %v87
    %v123 = vsel %vm120, 0.0, %v89
    %v124 = vsel %vm120, 0.0, %v91
    %v125 = vsel %vm120, 0.0, %v93
    %v126 = vsel %vm120, 0.0, %v95
    %v127 = vsel %vm120, 0.0, %v97
    %v128 = vsel %vm120, 0.0, %v99
    %v129 = vsel %vm120, 0.0, %v101
    %v130 = vsel %vm120, 0.0, %v103
    %v131 = vsel %vm120, 0.0, %v105
    %v132 = vsel %vm120, 0.0, %v107
    %v133 = vadd.f32 %v48, %v121
    %v134 = vadd.f32 %v49, %v122
    %v135 = vadd.f32 %v50, %v123
    %v136 = vadd.f32 %v51, %v124
    %v137 = vadd.f32 %v52, %v125
    %v138 = vadd.f32 %v53, %v126
    %v139 = vadd.f32 %v54, %v127
    %v140 = vadd.f32 %v55, %v128
    %v141 = vadd.f32 %v56, %v129
    %v142 = vadd.f32 %v57, %v130
    %v143 = vadd.f32 %v58, %v131
    %v144 = vadd.f32 %v59, %v132
    %v145 = vmul.f32 %v121, %v121
    %v146 = vmul.f32 %v122, %v122
    %v147 = vmul.f32 %v123, %v123
    %v148 = vmul.f32 %v124, %v124
    %v149 = vmul.f32 %v125, %v125
    %v150 = vmul.f32 %v126, %v126
    %v151 = vmul.f32 %v127, %v127
    %v152 = vmul.f32 %v128, %v128
    %v153 = vmul.f32 %v129, %v129
    %v154 = vmul.f32 %v130, %v130
    %v155 = vmul.f32 %v131, %v131
    %v156 = vmul.f32 %v132, %v132
    %v157 = vadd.f32 %v60, %v145
    %v158 = vadd.f32 %v61, %v146
    %v159 = vadd.f32 %v62, %v147
    %v160 = vadd.f32 %v63, %v148
    %v161 = vadd.f32 %v64, %v149
    %v162 = vadd.f32 %v65, %v150
    %v163 = vadd.f32 %v66, %v151
    %v164 = vadd.f32 %v67, %v152
    %v165 = vadd.f32 %v68, %v153
    %v166 = vadd.f32 %v69, %v154
    %v167 = vadd.f32 %v70, %v155
    %v168 = vadd.f32 %v71, %v156
    %169 = vrot.lane.b32.xlu0 %v48, 127
    %v170 = vpop.permute.xlu0 %169
    %171 = vrot.lane.b32.xlu0 %v49, 127
    %v172 = vpop.permute.xlu0 %171
    %173 = vrot.lane.b32.xlu0 %v50, 127
    %v174 = vpop.permute.xlu0 %173
    %175 = vrot.lane.b32.xlu0 %v51, 127
    %v176 = vpop.permute.xlu0 %175
    %177 = vrot.lane.b32.xlu0 %v52, 127
    %v178 = vpop.permute.xlu0 %177
    %179 = vrot.lane.b32.xlu0 %v53, 127
    %v180 = vpop.permute.xlu0 %179
    %181 = vrot.lane.b32.xlu0 %v54, 127
    %v182 = vpop.permute.xlu0 %181
    %183 = vrot.lane.b32.xlu0 %v55, 127
    %v184 = vpop.permute.xlu0 %183
    %185 = vrot.lane.b32.xlu0 %v56, 127
    %v186 = vpop.permute.xlu0 %185
    %187 = vrot.lane.b32.xlu0 %v57, 127
    %v188 = vpop.permute.xlu0 %187
    %189 = vrot.lane.b32.xlu0 %v58, 127
    %v190 = vpop.permute.xlu0 %189
    %191 = vrot.lane.b32.xlu0 %v59, 127
    %v192 = vpop.permute.xlu0 %191
    %vm205 = vcmask 121856
    %v206 = vsel %vm205, %v170, 0.0
    %v207 = vsel %vm205, %v172, 0.0
    %v208 = vsel %vm205, %v174, 0.0
    %v209 = vsel %vm205, %v176, 0.0
    %v210 = vsel %vm205, %v178, 0.0
    %v211 = vsel %vm205, %v180, 0.0
    %v212 = vsel %vm205, %v182, 0.0
    %v213 = vsel %vm205, %v184, 0.0
    %v214 = vsel %vm205, %v186, 0.0
    %v215 = vsel %vm205, %v188, 0.0
    %v216 = vsel %vm205, %v190, 0.0
    %v217 = vsel %vm205, %v192, 0.0
    %v218 = vadd.f32 %v133, %v206
    %v219 = vadd.f32 %v134, %v207
    %v220 = vadd.f32 %v135, %v208
    %v221 = vadd.f32 %v136, %v209
    %v222 = vadd.f32 %v137, %v210
    %v223 = vadd.f32 %v138, %v211
    %v224 = vadd.f32 %v139, %v212
    %v225 = vadd.f32 %v140, %v213
    %v226 = vadd.f32 %v141, %v214
    %v227 = vadd.f32 %v142, %v215
    %v228 = vadd.f32 %v143, %v216
    %v229 = vadd.f32 %v144, %v217
    %v230 = vmul.f32 %v206, %v206
    %v231 = vmul.f32 %v207, %v207
    %v232 = vmul.f32 %v208, %v208
    %v233 = vmul.f32 %v209, %v209
    %v234 = vmul.f32 %v210, %v210
    %v235 = vmul.f32 %v211, %v211
    %v236 = vmul.f32 %v212, %v212
    %v237 = vmul.f32 %v213, %v213
    %v238 = vmul.f32 %v214, %v214
    %v239 = vmul.f32 %v215, %v215
    %v240 = vmul.f32 %v216, %v216
    %v241 = vmul.f32 %v217, %v217
    %v242 = vadd.f32 %v157, %v230
    %v243 = vadd.f32 %v158, %v231
    %v244 = vadd.f32 %v159, %v232
    %v245 = vadd.f32 %v160, %v233
    %v246 = vadd.f32 %v161, %v234
    %v247 = vadd.f32 %v162, %v235
    %v248 = vadd.f32 %v163, %v236
    %v249 = vadd.f32 %v164, %v237
    %v250 = vadd.f32 %v165, %v238
    %v251 = vadd.f32 %v166, %v239
    %v252 = vadd.f32 %v167, %v240
    %v253 = vadd.f32 %v168, %v241
    %vm266 = vcmask 1040384
    %v267 = vrot.slane %v218, 7
    %v268 = vrot.slane %v219, 7
    %v269 = vsel %vm266, %v267, %v268
    %v270 = vrot.slane %v220, 7
    %v271 = vrot.slane %v221, 7
    %v272 = vsel %vm266, %v270, %v271
    %v273 = vrot.slane %v222, 7
    %v274 = vrot.slane %v223, 7
    %v275 = vsel %vm266, %v273, %v274
    %v276 = vrot.slane %v224, 7
    %v277 = vrot.slane %v225, 7
    %v278 = vsel %vm266, %v276, %v277
    %v279 = vrot.slane %v226, 7
    %v280 = vrot.slane %v227, 7
    %v281 = vsel %vm266, %v279, %v280
    %v282 = vrot.slane %v228, 7
    %v283 = vrot.slane %v229, 7
    %v284 = vsel %vm266, %v282, %v283
    %v297 = vsel %vm266, 0.0, %v267
    %v298 = vsel %vm266, 0.0, %v270
    %v299 = vsel %vm266, 0.0, %v273
    %v300 = vsel %vm266, 0.0, %v276
    %v301 = vsel %vm266, 0.0, %v279
    %v302 = vsel %vm266, 0.0, %v282
    %v303 = vadd.f32 %v218, %v297
    %v304 = vadd.f32 %v219, %v269
    %v305 = vadd.f32 %v220, %v298
    %v306 = vadd.f32 %v221, %v272
    %v307 = vadd.f32 %v222, %v299
    %v308 = vadd.f32 %v223, %v275
    %v309 = vadd.f32 %v224, %v300
    %v310 = vadd.f32 %v225, %v278
    %v311 = vadd.f32 %v226, %v301
    %v312 = vadd.f32 %v227, %v281
    %v313 = vadd.f32 %v228, %v302
    %v314 = vadd.f32 %v229, %v284
    %v327 = vrot.slane %v242, 7
    %v328 = vrot.slane %v243, 7
    %v329 = vsel %vm266, %v327, %v328
    %v330 = vrot.slane %v244, 7
    %v331 = vrot.slane %v245, 7
    %v332 = vsel %vm266, %v330, %v331
    %v333 = vrot.slane %v246, 7
    %v334 = vrot.slane %v247, 7
    %v335 = vsel %vm266, %v333, %v334
    %v336 = vrot.slane %v248, 7
    %v337 = vrot.slane %v249, 7
    %v338 = vsel %vm266, %v336, %v337
    %v339 = vrot.slane %v250, 7
    %v340 = vrot.slane %v251, 7
    %v341 = vsel %vm266, %v339, %v340
    %v342 = vrot.slane %v252, 7
    %v343 = vrot.slane %v253, 7
    %v344 = vsel %vm266, %v342, %v343
    %v357 = vsel %vm266, 0.0, %v327
    %v358 = vsel %vm266, 0.0, %v330
    %v359 = vsel %vm266, 0.0, %v333
    %v360 = vsel %vm266, 0.0, %v336
    %v361 = vsel %vm266, 0.0, %v339
    %v362 = vsel %vm266, 0.0, %v342
    %v363 = vadd.f32 %v242, %v357
    %v364 = vadd.f32 %v243, %v329
    %v365 = vadd.f32 %v244, %v358
    %v366 = vadd.f32 %v245, %v332
    %v367 = vadd.f32 %v246, %v359
    %v368 = vadd.f32 %v247, %v335
    %v369 = vadd.f32 %v248, %v360
    %v370 = vadd.f32 %v249, %v338
    %v371 = vadd.f32 %v250, %v361
    %v372 = vadd.f32 %v251, %v341
    %v373 = vadd.f32 %v252, %v362
    %v374 = vadd.f32 %v253, %v344
    %vm375 = vcmask 1046528
    %v376 = vrot.slane %v218, 1
    %v377 = vrot.slane %v219, 1
    %v378 = vsel %vm375, %v376, %v377
    %v379 = vrot.slane %v220, 1
    %v380 = vrot.slane %v221, 1
    %v381 = vsel %vm375, %v379, %v380
    %v382 = vrot.slane %v222, 1
    %v383 = vrot.slane %v223, 1
    %v384 = vsel %vm375, %v382, %v383
    %v385 = vrot.slane %v224, 1
    %v386 = vrot.slane %v225, 1
    %v387 = vsel %vm375, %v385, %v386
    %v388 = vrot.slane %v226, 1
    %v389 = vrot.slane %v227, 1
    %v390 = vsel %vm375, %v388, %v389
    %v391 = vrot.slane %v228, 1
    %v392 = vrot.slane %v229, 1
    %v393 = vsel %vm375, %v391, %v392
    %v406 = vsel %vm375, %v377, 0.0
    %v407 = vsel %vm375, %v380, 0.0
    %v408 = vsel %vm375, %v383, 0.0
    %v409 = vsel %vm375, %v386, 0.0
    %v410 = vsel %vm375, %v389, 0.0
    %v411 = vsel %vm375, %v392, 0.0
    %v412 = vadd.f32 %v303, %v378
    %v413 = vadd.f32 %v304, %v406
    %v414 = vadd.f32 %v305, %v381
    %v415 = vadd.f32 %v306, %v407
    %v416 = vadd.f32 %v307, %v384
    %v417 = vadd.f32 %v308, %v408
    %v418 = vadd.f32 %v309, %v387
    %v419 = vadd.f32 %v310, %v409
    %v420 = vadd.f32 %v311, %v390
    %v421 = vadd.f32 %v312, %v410
    %v422 = vadd.f32 %v313, %v393
    %v423 = vadd.f32 %v314, %v411
    %v424 = vrot.slane %v242, 1
    %v425 = vrot.slane %v243, 1
    %v426 = vsel %vm375, %v424, %v425
    %v427 = vrot.slane %v244, 1
    %v428 = vrot.slane %v245, 1
    %v429 = vsel %vm375, %v427, %v428
    %v430 = vrot.slane %v246, 1
    %v431 = vrot.slane %v247, 1
    %v432 = vsel %vm375, %v430, %v431
    %v433 = vrot.slane %v248, 1
    %v434 = vrot.slane %v249, 1
    %v435 = vsel %vm375, %v433, %v434
    %v436 = vrot.slane %v250, 1
    %v437 = vrot.slane %v251, 1
    %v438 = vsel %vm375, %v436, %v437
    %v439 = vrot.slane %v252, 1
    %v440 = vrot.slane %v253, 1
    %v441 = vsel %vm375, %v439, %v440
    %v454 = vsel %vm375, %v425, 0.0
    %v455 = vsel %vm375, %v428, 0.0
    %v456 = vsel %vm375, %v431, 0.0
    %v457 = vsel %vm375, %v434, 0.0
    %v458 = vsel %vm375, %v437, 0.0
    %v459 = vsel %vm375, %v440, 0.0
    %v460 = vadd.f32 %v363, %v426
    %v461 = vadd.f32 %v364, %v454
    %v462 = vadd.f32 %v365, %v429
    %v463 = vadd.f32 %v366, %v455
    %v464 = vadd.f32 %v367, %v432
    %v465 = vadd.f32 %v368, %v456
    %v466 = vadd.f32 %v369, %v435
    %v467 = vadd.f32 %v370, %v457
    %v468 = vadd.f32 %v371, %v438
    %v469 = vadd.f32 %v372, %v458
    %v470 = vadd.f32 %v373, %v441
    %v471 = vadd.f32 %v374, %v459
    %v472 = vmul.f32 %v412, 0.11111111
    %v473 = vmul.f32 %v413, 0.11111111
    %v474 = vmul.f32 %v414, 0.11111111
    %v475 = vmul.f32 %v415, 0.11111111
    %v476 = vmul.f32 %v416, 0.11111111
    %v477 = vmul.f32 %v417, 0.11111111
    %v478 = vmul.f32 %v418, 0.11111111
    %v479 = vmul.f32 %v419, 0.11111111
    %v480 = vmul.f32 %v420, 0.11111111
    %v481 = vmul.f32 %v421, 0.11111111
    %v482 = vmul.f32 %v422, 0.11111111
    %v483 = vmul.f32 %v423, 0.11111111
    %v484 = vmul.f32 %v460, 0.11111111
    %v485 = vmul.f32 %v461, 0.11111111
    %v486 = vmul.f32 %v462, 0.11111111
    %v487 = vmul.f32 %v463, 0.11111111
    %v488 = vmul.f32 %v464, 0.11111111
    %v489 = vmul.f32 %v465, 0.11111111
    %v490 = vmul.f32 %v466, 0.11111111
    %v491 = vmul.f32 %v467, 0.11111111
    %v492 = vmul.f32 %v468, 0.11111111
    %v493 = vmul.f32 %v469, 0.11111111
    %v494 = vmul.f32 %v470, 0.11111111
    %v495 = vmul.f32 %v471, 0.11111111
    %v496 = vmul.f32 %v472, %v472
    %v497 = vmul.f32 %v473, %v473
    %v498 = vmul.f32 %v474, %v474
    %v499 = vmul.f32 %v475, %v475
    %v500 = vmul.f32 %v476, %v476
    %v501 = vmul.f32 %v477, %v477
    %v502 = vmul.f32 %v478, %v478
    %v503 = vmul.f32 %v479, %v479
    %v504 = vmul.f32 %v480, %v480
    %v505 = vmul.f32 %v481, %v481
    %v506 = vmul.f32 %v482, %v482
    %v507 = vmul.f32 %v483, %v483
    %v508 = vsub.f32 %v484, %v496
    %v509 = vsub.f32 %v485, %v497
    %v510 = vsub.f32 %v486, %v498
    %v511 = vsub.f32 %v487, %v499
    %v512 = vsub.f32 %v488, %v500
    %v513 = vsub.f32 %v489, %v501
    %v514 = vsub.f32 %v490, %v502
    %v515 = vsub.f32 %v491, %v503
    %v516 = vsub.f32 %v492, %v504
    %v517 = vsub.f32 %v493, %v505
    %v518 = vsub.f32 %v494, %v506
    %v519 = vsub.f32 %v495, %v507
    %vm520 = vcmask 130048
    %v521 = vsel %vm520, %v508, 0.0
    %522 = vadd.xlane.f32.xlu0 %v521
    %v523 = vpop.xlane.xlu0 %522
    %v524 = vsel %vm520, %v509, 0.0
    %525 = vadd.xlane.f32.xlu0 %v524
    %v526 = vpop.xlane.xlu0 %525
    %v527 = vsel %vm520, %v510, 0.0
    %528 = vadd.xlane.f32.xlu0 %v527
    %v529 = vpop.xlane.xlu0 %528
    %v530 = vsel %vm520, %v511, 0.0
    %531 = vadd.xlane.f32.xlu0 %v530
    %v532 = vpop.xlane.xlu0 %531
    %v533 = vsel %vm520, %v512, 0.0
    %534 = vadd.xlane.f32.xlu0 %v533
    %v535 = vpop.xlane.xlu0 %534
    %v536 = vsel %vm520, %v513, 0.0
    %537 = vadd.xlane.f32.xlu0 %v536
    %v538 = vpop.xlane.xlu0 %537
    %v539 = vsel %vm520, %v514, 0.0
    %540 = vadd.xlane.f32.xlu0 %v539
    %v541 = vpop.xlane.xlu0 %540
    %v542 = vsel %vm520, %v515, 0.0
    %543 = vadd.xlane.f32.xlu0 %v542
    %v544 = vpop.xlane.xlu0 %543
    %v545 = vsel %vm520, %v516, 0.0
    %546 = vadd.xlane.f32.xlu0 %v545
    %v547 = vpop.xlane.xlu0 %546
    %v548 = vsel %vm520, %v517, 0.0
    %549 = vadd.xlane.f32.xlu0 %v548
    %v550 = vpop.xlane.xlu0 %549
    %v551 = vsel %vm520, %v518, 0.0
    %552 = vadd.xlane.f32.xlu0 %v551
    %v553 = vpop.xlane.xlu0 %552
    %v554 = vsel %vm520, %v519, 0.0
    %555 = vadd.xlane.f32.xlu0 %v554
    %v556 = vpop.xlane.xlu0 %555
    %v557 = vadd.f32 %v523, %v526
    %v558 = vrot.slane %v557, 4
    %v559 = vadd.f32 %v557, %v558
    %v560 = vrot.slane %v559, 2
    %v561 = vadd.f32 %v559, %v560
    %v562 = vrot.slane %v561, 1
    %v563 = vadd.f32 %v561, %v562
    %v564 = vadd.f32 %v529, %v532
    %v565 = vrot.slane %v564, 4
    %v566 = vadd.f32 %v564, %v565
    %v567 = vrot.slane %v566, 2
    %v568 = vadd.f32 %v566, %v567
    %v569 = vrot.slane %v568, 1
    %v570 = vadd.f32 %v568, %v569
    %v571 = vadd.f32 %v535, %v538
    %v572 = vrot.slane %v571, 4
    %v573 = vadd.f32 %v571, %v572
    %v574 = vrot.slane %v573, 2
    %v575 = vadd.f32 %v573, %v574
    %v576 = vrot.slane %v575, 1
    %v577 = vadd.f32 %v575, %v576
    %v578 = vadd.f32 %v541, %v544
    %v579 = vrot.slane %v578, 4
    %v580 = vadd.f32 %v578, %v579
    %v581 = vrot.slane %v580, 2
    %v582 = vadd.f32 %v580, %v581
    %v583 = vrot.slane %v582, 1
    %v584 = vadd.f32 %v582, %v583
    %v585 = vadd.f32 %v547, %v550
    %v586 = vrot.slane %v585, 4
    %v587 = vadd.f32 %v585, %v586
    %v588 = vrot.slane %v587, 2
    %v589 = vadd.f32 %v587, %v588
    %v590 = vrot.slane %v589, 1
    %v591 = vadd.f32 %v589, %v590
    %v592 = vadd.f32 %v553, %v556
    %v593 = vrot.slane %v592, 4
    %v594 = vadd.f32 %v592, %v593
    %v595 = vrot.slane %v594, 2
    %v596 = vadd.f32 %v594, %v595
    %v597 = vrot.slane %v596, 1
    %v598 = vadd.f32 %v596, %v597
    %v599 = vmul.f32 %v563, 0.00390625
    %v600 = vmul.f32 %v570, 0.00390625
    %v601 = vmul.f32 %v577, 0.00390625
    %v602 = vmul.f32 %v584, 0.00390625
    %v603 = vmul.f32 %v591, 0.00390625
    %v604 = vmul.f32 %v598, 0.00390625
    %v605 = vsub.f32 %v48, %v472
    %v606 = vsub.f32 %v49, %v473
    %v607 = vsub.f32 %v50, %v474
    %v608 = vsub.f32 %v51, %v475
    %v609 = vsub.f32 %v52, %v476
    %v610 = vsub.f32 %v53, %v477
    %v611 = vsub.f32 %v54, %v478
    %v612 = vsub.f32 %v55, %v479
    %v613 = vsub.f32 %v56, %v480
    %v614 = vsub.f32 %v57, %v481
    %v615 = vsub.f32 %v58, %v482
    %v616 = vsub.f32 %v59, %v483
    %v617 = vrcp.pop %v508
    %v618 = vmul.f32 %v599, %v617
    %v619 = vrcp.pop %v509
    %v620 = vmul.f32 %v599, %v619
    %v621 = vrcp.pop %v510
    %v622 = vmul.f32 %v600, %v621
    %v623 = vrcp.pop %v511
    %v624 = vmul.f32 %v600, %v623
    %v625 = vrcp.pop %v512
    %v626 = vmul.f32 %v601, %v625
    %v627 = vrcp.pop %v513
    %v628 = vmul.f32 %v601, %v627
    %v629 = vrcp.pop %v514
    %v630 = vmul.f32 %v602, %v629
    %v631 = vrcp.pop %v515
    %v632 = vmul.f32 %v602, %v631
    %v633 = vrcp.pop %v516
    %v634 = vmul.f32 %v603, %v633
    %v635 = vrcp.pop %v517
    %v636 = vmul.f32 %v603, %v635
    %v637 = vrcp.pop %v518
    %v638 = vmul.f32 %v604, %v637
    %v639 = vrcp.pop %v519
    %v640 = vmul.f32 %v604, %v639
    %v641 = vsub.f32 1.0, %v618
    %v642 = vsub.f32 1.0, %v620
    %v643 = vsub.f32 1.0, %v622
    %v644 = vsub.f32 1.0, %v624
    %v645 = vsub.f32 1.0, %v626
    %v646 = vsub.f32 1.0, %v628
    %v647 = vsub.f32 1.0, %v630
    %v648 = vsub.f32 1.0, %v632
    %v649 = vsub.f32 1.0, %v634
    %v650 = vsub.f32 1.0, %v636
    %v651 = vsub.f32 1.0, %v638
    %v652 = vsub.f32 1.0, %v640
    %v653 = vmul.f32 %v605, %v641
    %v654 = vmul.f32 %v606, %v642
    %v655 = vmul.f32 %v607, %v643
    %v656 = vmul.f32 %v608, %v644
    %v657 = vmul.f32 %v609, %v645
    %v658 = vmul.f32 %v610, %v646
    %v659 = vmul.f32 %v611, %v647
    %v660 = vmul.f32 %v612, %v648
    %v661 = vmul.f32 %v613, %v649
    %v662 = vmul.f32 %v614, %v650
    %v663 = vmul.f32 %v615, %v651
    %v664 = vmul.f32 %v616, %v652
    %v665 = vadd.f32 %v472, %v653
    %v666 = vadd.f32 %v473, %v654
    %v667 = vadd.f32 %v474, %v655
    %v668 = vadd.f32 %v475, %v656
    %v669 = vadd.f32 %v476, %v657
    %v670 = vadd.f32 %v477, %v658
    %v671 = vadd.f32 %v478, %v659
    %v672 = vadd.f32 %v479, %v660
    %v673 = vadd.f32 %v480, %v661
    %v674 = vadd.f32 %v481, %v662
    %v675 = vadd.f32 %v482, %v663
    %v676 = vadd.f32 %v483, %v664
    %vm677 = vcmp.lt.f32.partialorder %v508, %v599
    %vm678 = vcmp.lt.f32.partialorder %v509, %v599
    %vm679 = vcmp.lt.f32.partialorder %v510, %v600
    %vm680 = vcmp.lt.f32.partialorder %v511, %v600
    %vm681 = vcmp.lt.f32.partialorder %v512, %v601
    %vm682 = vcmp.lt.f32.partialorder %v513, %v601
    %vm683 = vcmp.lt.f32.partialorder %v514, %v602
    %vm684 = vcmp.lt.f32.partialorder %v515, %v602
    %vm685 = vcmp.lt.f32.partialorder %v516, %v603
    %vm686 = vcmp.lt.f32.partialorder %v517, %v603
    %vm687 = vcmp.lt.f32.partialorder %v518, %v604
    %vm688 = vcmp.lt.f32.partialorder %v519, %v604
    %v689 = vsel %vm677, %v472, %v665
    %v690 = vsel %vm678, %v473, %v666
    %v691 = vsel %vm679, %v474, %v667
    %v692 = vsel %vm680, %v475, %v668
    %v693 = vsel %vm681, %v476, %v669
    %v694 = vsel %vm682, %v477, %v670
    %v695 = vsel %vm683, %v478, %v671
    %v696 = vsel %vm684, %v479, %v672
    %v697 = vsel %vm685, %v480, %v673
    %v698 = vsel %vm686, %v481, %v674
    %v699 = vsel %vm687, %v482, %v675
    %v700 = vsel %vm688, %v483, %v676
    %701 = vst.msk [vmem:[#allocation5] sm:$0xff] %vm520, %v689
    %702 = vst.msk [vmem:[#allocation5 + $0x8] sm:$0xff] %vm520, %v690
    %703 = vst.msk [vmem:[#allocation5 + $0x10] sm:$0xff] %vm520, %v691
    %704 = vst.msk [vmem:[#allocation5 + $0x18] sm:$0xff] %vm520, %v692
    %705 = vst.msk [vmem:[#allocation5 + $0x20] sm:$0xff] %vm520, %v693
    %706 = vst.msk [vmem:[#allocation5 + $0x28] sm:$0xff] %vm520, %v694
    %707 = vst.msk [vmem:[#allocation5 + $0x30] sm:$0xff] %vm520, %v695
    %708 = vst.msk [vmem:[#allocation5 + $0x38] sm:$0xff] %vm520, %v696
    %709 = vst.msk [vmem:[#allocation5 + $0x40] sm:$0xff] %vm520, %v697
    %710 = vst.msk [vmem:[#allocation5 + $0x48] sm:$0xff] %vm520, %v698
    %711 = vst.msk [vmem:[#allocation5 + $0x50] sm:$0xff] %vm520, %v699
    %712 = vst.msk [vmem:[#allocation5 + $0x58] sm:$0xff] %vm520, %v700
    // Predicated region
    $region10: #{wiener_filter_batch.1} parent=1 // pred_check
      _
    $region11: #{wiener_filter_batch.1} parent=1 // pred_check_branch
      %714 = sbr.rel (0) target = $region13
    $region12: #{wiener_filter_batch.1} parent=1 // pred_region
      %s716 = ssub.s32 1536, 1536
      %717 = vsyncadd [#allocation4], %s716
      %s718 = sshll.u32 [#allocation5], 4
      %s719 = int_to_ptr.vmem [resolvable:$true] %s718
      %724 = dma.vmem_to_hbm [thread:$0]  %s719, 1536, %s1, [#allocation4], 128, 128, 8
    $region13: #{wiener_filter_batch.1} parent=1 // pred_fallthru
      _
    // Predicated region
    $region14: #{wiener_filter_batch.1} parent=1 // pred_check
      _
    $region15: #{wiener_filter_batch.1} parent=1 // pred_check_branch
      %726 = sbr.rel (0) target = $region17
    $region16: #{wiener_filter_batch.1} parent=1 // pred_region
      %727 = dma.done [#allocation4], 1536
    $region17: #{wiener_filter_batch.1} parent=1 // pred_fallthru
      _
    %728 = vsyncpa [#allocation3], 1
    %729 = vsyncpa [#allocation4], 1

</llo_original>
